<compile_context>
chip_gen: v5e
topology: v5e:2x2
jax: 0.10.0
libtpu: 0.0.40
codegen_flags: <defaults>
</compile_context>

<pallas_src>
import jax
import jax.numpy as jnp
from jax import lax
from jax.experimental import pallas as pl
from jax.experimental.pallas import tpu as pltpu


def _conv_relu_kernel(p_ref, w_ref, b_ref, o_ref):
    # p_ref: (1, K*K*Cin, H*W)   im2col patches for one batch element
    # w_ref: (Cout, K*K*Cin)     flattened conv weights
    # b_ref: (Cout, 1)           bias column (broadcasts over the lane axis)
    # o_ref: (1, Cout, H*W)      transposed output tile (lane-dense: H*W lanes)
    acc = jnp.dot(w_ref[...], p_ref[0],
                  preferred_element_type=jnp.float32)        # (Cout, H*W) f32
    acc = acc + b_ref[...].astype(jnp.float32)
    o_ref[...] = jnp.maximum(acc, 0.0)[None].astype(o_ref.dtype)


def conv2d_with_relu(x_nchw, weight_oihw, bias, *, kernel_size=3,
                     compute_dtype=None):
    """Forward pass of the PyTorch conv2d_with_relu module.

    x_nchw:       (N, Cin, H, W)
    weight_oihw:  (Cout, Cin, K, K)    (PyTorch Conv2d weight layout)
    bias:         (Cout,)
    compute_dtype: optional matmul-input dtype (e.g. jnp.bfloat16 on v6e/v7x);
                   accumulation stays f32, output keeps x's dtype.
    returns:      (N, Cout, H, W)
    """
    N, Cin, H, W = x_nchw.shape
    Cout = weight_oihw.shape[0]
    K = kernel_size
    assert K % 2 == 1, "padding=K//2 ('SAME') assumes odd kernel_size (module default 3)"
    pad = K // 2
    KKC = K * K * Cin
    HW = H * W
    mm_dtype = compute_dtype if compute_dtype is not None else x_nchw.dtype

    # ---- Glue: pure layout work, stays in NCHW; no transposes anywhere ------
    x_pad = jnp.pad(x_nchw, ((0, 0), (0, 0), (pad, pad), (pad, pad)))
    # im2col: stack the K*K shifted views along a new reduction axis, ordered
    # (cin, kh, kw) to exactly match weight.reshape(Cout, Cin*K*K).
    shifted = [x_pad[:, :, kh:kh + H, kw:kw + W]             # (N, Cin, H, W)
               for kh in range(K) for kw in range(K)]
    patches = jnp.stack(shifted, axis=2)                      # (N, Cin, K*K, H, W)
    patches = patches.reshape(N, KKC, HW).astype(mm_dtype)    # (N, K*K*Cin, H*W)
    w_flat = weight_oihw.reshape(Cout, KKC).astype(mm_dtype)  # (Cout, K*K*Cin)
    b_col = bias.reshape(Cout, 1).astype(jnp.float32)

    out_t = pl.pallas_call(
        _conv_relu_kernel,
        out_shape=jax.ShapeDtypeStruct((N, Cout, HW), x_nchw.dtype),
        grid_spec=pltpu.PrefetchScalarGridSpec(
            num_scalar_prefetch=0,
            grid=(N,),
            in_specs=[
                pl.BlockSpec((1, KKC, HW), lambda n: (n, 0, 0)),
                pl.BlockSpec((Cout, KKC), lambda n: (0, 0)),  # invariant block
                pl.BlockSpec((Cout, 1), lambda n: (0, 0)),    # invariant block
            ],
            out_specs=pl.BlockSpec((1, Cout, HW), lambda n: (n, 0, 0)),
        ),
        compiler_params=pltpu.CompilerParams(
            dimension_semantics=("parallel",),  # v7x: one batch element per TC
        ),
    )(patches, w_flat, b_col)

    # (N, Cout, H*W) -> (N, Cout, H, W): a pure reshape, no final transpose.
    # TODO(synk): for large H/W/Cin (v7x has only 64 MiB VMEM) tile H with a
    # K-1 halo in the index_map and set vmem_limit_bytes explicitly instead of
    # one whole-image block per grid step.
    return out_t.reshape(N, Cout, H, W)


if __name__ == "__main__":
    key = jax.random.PRNGKey(0)
    k_x, k_w, k_b = jax.random.split(key, 3)

    N, Cin, H, W = 2, 4, 16, 16
    Cout, K = 8, 3

    x = jax.random.normal(k_x, (N, Cin, H, W), dtype=jnp.float32)
    # Deterministic parameters (shapes match nn.Conv2d(Cin, Cout, 3, padding=1)).
    weight = jax.random.normal(k_w, (Cout, Cin, K, K), dtype=jnp.float32) * 0.1
    bias = jax.random.normal(k_b, (Cout,), dtype=jnp.float32) * 0.1

    out = conv2d_with_relu(x, weight, bias, kernel_size=K)
    out = jax.block_until_ready(out)

    # Reference check with plain XLA conv (same padding / NCHW / OIHW) + ReLU.
    ref = lax.conv_general_dilated(
        x, weight, window_strides=(1, 1), padding="SAME",
        dimension_numbers=("NCHW", "OIHW", "NCHW"),
    ) + bias.reshape(1, Cout, 1, 1)
    ref = jnp.maximum(ref, 0.0)

    assert out.shape == (N, Cout, H, W)
    assert jnp.allclose(out, ref, rtol=1e-4, atol=1e-4)
    print("KERNEL_OK")
</pallas_src>

<mosaic_0001>
module attributes {stable_mosaic.version = 11 : i64} {
  func.func @_conv_relu_kernel(%arg0: i32, %arg1: memref<1x36x256xf32, #tpu.memory_space<vmem>>, %arg2: memref<8x36xf32, #tpu.memory_space<vmem>>, %arg3: memref<8x1xf32, #tpu.memory_space<vmem>>, %arg4: memref<1x8x256xf32, #tpu.memory_space<vmem>>) attributes {dimension_semantics = [#tpu.dimension_semantics<parallel>], iteration_bounds = array<i64: 2>, scalar_prefetch = 0 : i64, scratch_operands = 0 : i64, tpu.core_type = #tpu.core_type<tc>, window_params = [{transform_indices = @transform_0, window_bounds = array<i64: 1, 36, 256>}, {pipeline_mode = #tpu.pipeline_mode<synchronous>, transform_indices = @transform_1, window_bounds = array<i64: 8, 36>}, {pipeline_mode = #tpu.pipeline_mode<synchronous>, transform_indices = @transform_2, window_bounds = array<i64: 8, 1>}, {transform_indices = @transform_3, window_bounds = array<i64: 1, 8, 256>}]} {
    %c0 = arith.constant 0 : index
    %c0_0 = arith.constant 0 : index
    %0 = vector.load %arg2[%c0, %c0_0] : memref<8x36xf32, #tpu.memory_space<vmem>>, vector<8x36xf32>
    %c0_1 = arith.constant 0 : index
    %c0_2 = arith.constant 0 : index
    %c0_3 = arith.constant 0 : index
    %1 = vector.load %arg1[%c0_1, %c0_2, %c0_3] : memref<1x36x256xf32, #tpu.memory_space<vmem>>, vector<1x36x256xf32>
    %2 = vector.shape_cast %1 : vector<1x36x256xf32> to vector<36x256xf32>
    %cst = arith.constant dense<0.000000e+00> : vector<8x256xf32>
    %3 = tpu.matmul %0, %2, %cst {dimension_numbers = #tpu.dot_dimension_numbers<[1], [0], [0], [1], [0, 0, 1, 1], [], []>} : vector<8x36xf32>, vector<36x256xf32>, vector<8x256xf32> -> vector<8x256xf32>
    %c0_4 = arith.constant 0 : index
    %c0_5 = arith.constant 0 : index
    %4 = vector.load %arg3[%c0_4, %c0_5] : memref<8x1xf32, #tpu.memory_space<vmem>>, vector<8x1xf32>
    %5 = vector.broadcast %4 : vector<8x1xf32> to vector<8x256xf32>
    %6 = arith.addf %3, %5 : vector<8x256xf32>
    %cst_6 = arith.constant 0.000000e+00 : f32
    %7 = vector.broadcast %cst_6 : f32 to vector<8x256xf32>
    %8 = arith.maximumf %6, %7 : vector<8x256xf32>
    %9 = vector.shape_cast %8 : vector<8x256xf32> to vector<1x8x256xf32>
    %c0_7 = arith.constant 0 : index
    %c0_8 = arith.constant 0 : index
    %c0_9 = arith.constant 0 : index
    %10 = vector.load %arg4[%c0_7, %c0_8, %c0_9] : memref<1x8x256xf32, #tpu.memory_space<vmem>>, vector<1x8x256xf32>
    tpu.vector_store %arg4[%c0_7, %c0_8, %c0_9], %9 {strides = array<i32>} : memref<1x8x256xf32, #tpu.memory_space<vmem>>, vector<1x8x256xf32>,
    return
  }
  func.func @transform_0(%arg0: i32) -> (i32, i32, i32) {
    %c0_i32 = arith.constant 0 : i32
    %c0_i32_0 = arith.constant 0 : i32
    %c0_i32_1 = arith.constant 0 : i32
    return %arg0, %c0_i32, %c0_i32_0 : i32, i32, i32
  }
  func.func @transform_1(%arg0: i32) -> (i32, i32) {
    %c0_i32 = arith.constant 0 : i32
    %c0_i32_0 = arith.constant 0 : i32
    %c0_i32_1 = arith.constant 0 : i32
    return %c0_i32, %c0_i32_0 : i32, i32
  }
  func.func @transform_2(%arg0: i32) -> (i32, i32) {
    %c0_i32 = arith.constant 0 : i32
    %c0_i32_0 = arith.constant 0 : i32
    %c0_i32_1 = arith.constant 0 : i32
    return %c0_i32, %c0_i32_0 : i32, i32
  }
  func.func @transform_3(%arg0: i32) -> (i32, i32, i32) {
    %c0_i32 = arith.constant 0 : i32
    %c0_i32_0 = arith.constant 0 : i32
    %c0_i32_1 = arith.constant 0 : i32
    return %arg0, %c0_i32, %c0_i32_0 : i32, i32, i32
  }
}

</mosaic_0001>

<llo_original>
// kernel: tpu_custom_call.1
$region0: #{tpu_custom_call.1}
  #allocation0 [shape = 'u32[]', space=smem, size = 0x4, offset = 0x4, fixed_abs, tag = 'smem constant byte address 0x4 - core index']
  #allocation1 [shape = 'u32[72,128]{1,0:T(1,128)}', space=vmem, size = 0x9000, scoped, tag = 'internal scratch']
  %s0 = inlined_call_operand.vmem [shape: f32[2,36,256], index: 0, kind: input, shape index: {}]
  %s1 = inlined_call_operand.vmem [shape: f32[8,36], index: 1, kind: input, shape index: {}]
  %s2 = inlined_call_operand.vmem [shape: f32[8,1], index: 2, kind: input, shape index: {}]
  %s3 = inlined_call_operand.hbm [shape: f32[2,8,256], index: 3, kind: output, shape index: {}]
  %s4 = sld [smem:[#allocation0]]
  $region45: #{tpu_custom_call.1} parent=0
    _
  %s6 = ssub.s32 1, %s4
  %s7 = scalar_select 0, %s6, %s4
  $region1: #{tpu_custom_call.1} parent=0
    #allocation2 [shape = 'u8[16384]{0}', space=vmem, size = 0x4000, scoped, tag = 'output window, operand 0']
    #allocation3 [shape = 's32[2]{0}', space=sflag, size = 0x8, scoped, tag = 'scoped memory for tpu_custom_call.1']
    %8 = vsyncpa [#allocation3], 0
    %s9 = scalar_lea.sflag [#allocation3], 1
    %10 = vsyncpa %s9, 0
    loop: start=0, step=1, limit=4
    $region2: #{tpu_custom_call.1} parent=1 // loop_pre_header
      _
    $region3: #{tpu_custom_call.1} parent=1 // loop_header
      %s12 = sphi 0, %s16
      %p13 = scmp.ge.s32.totalorder %s12, 4
      %s22 = sphi 0, %s24
      %s25 = sphi 0, %s22
      %s26 = sphi 0, %s25
      %s42 = sphi 0, %s26
      %s46 = sphi 0, %s46
      %s48 = sphi 0, %s46
      %s49 = sphi 0, %s48
      %s63 = sphi 0, %s49
      %s67 = sphi 0, %s67
      %s69 = sphi 0, %s67
      %s70 = sphi 0, %s69
      %s84 = sphi 0, %s70
      %s90 = sphi 0, %s92
      %s93 = sphi 0, %s90
      %s94 = sphi 0, %s93
      %s110 = sphi 0, %s94
    $region4: #{tpu_custom_call.1} parent=1 // loop_header_branch
      %15 = sbr.rel (%p13) target = $region8
    $region5: #{tpu_custom_call.1} parent=1 // loop_body
      %s17 = ssub.s32 %s12, 1
      %s18 = ssub.s32 %s12, 2
      %s19 = sadd.s32 %s12, 1
      %s20 = ssub.s32 %s12, %s19
      %p21 = scmp.eq.s32.totalorder %s20, 0
      %s23 = sadd.s32 %s22, 1
      %s24 = scalar_select %p21, %s22, %s23
      %p27 = pneg %p21
      %p28 = scmp.eq.s32.totalorder %s12, 1
      %p29 = por %p27, %p28
      %p30 = scmp.ne.s32.totalorder %s22, %s25
      %p31 = scmp.eq.s32.totalorder %s12, 0
      %p32 = por %p30, %p31
      %p33 = scmp.ne.s32.totalorder %s22, %s25
      %p34 = scmp.eq.s32.totalorder %s17, 1
      %p35 = por %p33, %p34
      %p36 = scmp.ne.s32.totalorder %s25, %s26
      %p37 = scmp.eq.s32.totalorder %s17, 0
      %p38 = por %p36, %p37
      %p39 = scmp.ne.s32.totalorder %s25, %s26
      %p40 = scmp.eq.s32.totalorder %s18, 1
      %p41 = por %p39, %p40
      %p43 = scmp.ne.s32.totalorder %s26, %s42
      %p44 = scmp.eq.s32.totalorder %s18, 0
      %p45 = por %p43, %p44
      %s47 = sadd.s32 %s46, 1
      %p50 = scmp.eq.s32.totalorder %s12, 1
      %p51 = scmp.ne.s32.totalorder %s46, %s48
      %p52 = scmp.eq.s32.totalorder %s12, 0
      %p53 = por %p51, %p52
      %p54 = scmp.ne.s32.totalorder %s46, %s48
      %p55 = scmp.eq.s32.totalorder %s17, 1
      %p56 = por %p54, %p55
      %p57 = scmp.ne.s32.totalorder %s48, %s49
      %p58 = scmp.eq.s32.totalorder %s17, 0
      %p59 = por %p57, %p58
      %p60 = scmp.ne.s32.totalorder %s48, %s49
      %p61 = scmp.eq.s32.totalorder %s18, 1
      %p62 = por %p60, %p61
      %p64 = scmp.ne.s32.totalorder %s49, %s63
      %p65 = scmp.eq.s32.totalorder %s18, 0
      %p66 = por %p64, %p65
      %s68 = sadd.s32 %s67, 1
      %p71 = scmp.eq.s32.totalorder %s12, 1
      %p72 = scmp.ne.s32.totalorder %s67, %s69
      %p73 = scmp.eq.s32.totalorder %s12, 0
      %p74 = por %p72, %p73
      %p75 = scmp.ne.s32.totalorder %s67, %s69
      %p76 = scmp.eq.s32.totalorder %s17, 1
      %p77 = por %p75, %p76
      %p78 = scmp.ne.s32.totalorder %s69, %s70
      %p79 = scmp.eq.s32.totalorder %s17, 0
      %p80 = por %p78, %p79
      %p81 = scmp.ne.s32.totalorder %s69, %s70
      %p82 = scmp.eq.s32.totalorder %s18, 1
      %p83 = por %p81, %p82
      %p85 = scmp.ne.s32.totalorder %s70, %s84
      %p86 = scmp.eq.s32.totalorder %s18, 0
      %p87 = por %p85, %p86
      %s88 = ssub.s32 %s12, %s19
      %p89 = scmp.eq.s32.totalorder %s88, 0
      %s91 = sadd.s32 %s90, 1
      %s92 = scalar_select %p89, %s90, %s91
      %p95 = pneg %p89
      %p96 = scmp.eq.s32.totalorder %s12, 1
      %p97 = por %p95, %p96
      %p98 = scmp.ne.s32.totalorder %s90, %s93
      %p99 = scmp.eq.s32.totalorder %s12, 0
      %p100 = por %p98, %p99
      %p101 = scmp.ne.s32.totalorder %s90, %s93
      %p102 = scmp.eq.s32.totalorder %s17, 1
      %p103 = por %p101, %p102
      %p104 = scmp.ne.s32.totalorder %s93, %s94
      %p105 = scmp.eq.s32.totalorder %s17, 0
      %p106 = por %p104, %p105
      %p107 = scmp.ne.s32.totalorder %s93, %s94
      %p108 = scmp.eq.s32.totalorder %s18, 1
      %p109 = por %p107, %p108
      %p111 = scmp.ne.s32.totalorder %s94, %s110
      %p112 = scmp.eq.s32.totalorder %s18, 0
      %p113 = por %p111, %p112
      %p114 = scmp.le.s32.totalorder 1, %s12
      %p115 = scmp.lt.s32.totalorder %s12, 3
      %p116 = pnand %p114, %p115
      %p117 = pneg %p116
      // Predicated region
      $region9: #{tpu_custom_call.1} parent=5 // pred_check
        _
      $region10: #{tpu_custom_call.1} parent=5 // pred_check_branch
        %119 = sbr.rel (%p116) target = $region12
      $region11: #{tpu_custom_call.1} parent=5 // pred_region
        %s120 = ssub.s32 %s12, 1
        // Predicated region
        $region13: #{tpu_custom_call.1} parent=11 // pred_check
          %p121 = pneg %p59
        $region14: #{tpu_custom_call.1} parent=11 // pred_check_branch
          %123 = sbr.rel (%p121) target = $region16
        $region15: #{tpu_custom_call.1} parent=11 // pred_region
          _
        $region16: #{tpu_custom_call.1} parent=11 // pred_fallthru
          _
        // Predicated region
        $region17: #{tpu_custom_call.1} parent=11 // pred_check
          %p124 = pneg %p80
        $region18: #{tpu_custom_call.1} parent=11 // pred_check_branch
          %126 = sbr.rel (%p124) target = $region20
        $region19: #{tpu_custom_call.1} parent=11 // pred_region
          _
        $region20: #{tpu_custom_call.1} parent=11 // pred_fallthru
          _
      $region12: #{tpu_custom_call.1} parent=5 // pred_fallthru
        _
      %p127 = scmp.lt.s32.totalorder %s12, 2
      // Predicated region
      $region21: #{tpu_custom_call.1} parent=5 // pred_check
        %p128 = pneg %p127
      $region22: #{tpu_custom_call.1} parent=5 // pred_check_branch
        %130 = sbr.rel (%p128) target = $region24
      $region23: #{tpu_custom_call.1} parent=5 // pred_region
        // Predicated region
        $region25: #{tpu_custom_call.1} parent=23 // pred_check
          %p131 = pneg %p32
        $region26: #{tpu_custom_call.1} parent=23 // pred_check_branch
          %133 = sbr.rel (%p131) target = $region28
        $region27: #{tpu_custom_call.1} parent=23 // pred_region
          %p134 = scmp.lt.s32.totalorder %s12, 1
          %s135 = scalar_select %p134, %s12, 1
          %s136 = smul.addr %s135, 10
          %s137 = smul.addr %s136, 8
          %s138 = scalar_lea.vmem %s0, %s137
        $region28: #{tpu_custom_call.1} parent=23 // pred_fallthru
          _
      $region24: #{tpu_custom_call.1} parent=5 // pred_fallthru
        _
      %p139 = scmp.le.s32.totalorder 1, %s12
      %p140 = scmp.lt.s32.totalorder %s12, 3
      %p141 = pnand %p139, %p140
      %p142 = pneg %p141
      // Predicated region
      $region29: #{tpu_custom_call.1} parent=5 // pred_check
        _
      $region30: #{tpu_custom_call.1} parent=5 // pred_check_branch
        %144 = sbr.rel (%p141) target = $region32
      $region31: #{tpu_custom_call.1} parent=5 // pred_region
        %s145 = ssub.s32 %s12, 1
        %p146 = scmp.lt.s32.totalorder %s17, 1
        %s147 = scalar_select %p146, %s17, 1
        %s148 = smul.addr %s147, 10
        %s149 = smul.addr %s148, 8
        %s150 = scalar_lea.vmem %s0, %s149
        %p151 = pneg %p38
        %p152 = pneg %p35
        %p153 = pneg %p59
        %p154 = pneg %p56
        %p155 = pneg %p80
        %p156 = pneg %p77
        %p157 = pneg %p106
        %p158 = pneg %p103
        %s159 = sand.u32 %s93, 1
        %s160 = scalar_lea.sflag [#allocation3], %s159
        %s161 = sand.u32 %s93, 1
        %s162 = smul.addr %s161, 16
        %s163 = scalar_lea.vmem [#allocation2], %s162
        %p164 = scmp.lt.s32.totalorder %s17, 1
        %s165 = scalar_select %p164, %s17, 1
        %s166 = smul.addr %s165, 10
        %s167 = smul.addr %s166, 8
        %s168 = scalar_lea.vmem %s0, %s167
        %v169 = vld [vmem:[%s1] sm:$0xff]
        %v170 = vld [vmem:[%s168] sm:$0xff]
        %v171 = vld [vmem:[%s168 + $0x8] sm:$0xff]
        %v172 = vld [vmem:[%s168 + $0x10] sm:$0xff]
        %v173 = vld [vmem:[%s168 + $0x18] sm:$0xff]
        %v174 = vld [vmem:[%s168 + $0x20] sm:$0xff]
        %v175 = vld [vmem:[%s168 + $0x28] sm:$0xff]
        %v176 = vld [vmem:[%s168 + $0x30] sm:$0xff]
        %v177 = vld [vmem:[%s168 + $0x38] sm:$0xff]
        %v178 = vld [vmem:[%s168 + $0x40] sm:$0xf]
        %v179 = vld [vmem:[%s168 + $0x48] sm:$0xf]
        %v180 = vld [vmem:[%s2] sm:$0xff]
        %182 = vset.pattern.permute.xlu0 0
        %183 = vperm.xlu0 %182, %v180
        %v184 = vpop.permute.xlu0 %183
        %vm186 = vcmask 293888
        %v188 = vsel %vm186, %v169, 0
        %vm190 = vcmask 1043456
        %v192 = vsel %vm190, %v178, 0
        %v195 = vsel %vm190, %v179, 0
        %197 = vmatpush.msra.mxu0 0.0
        %198 = vmatpush.msra.mxu0 0.0
        %199 = vmatpush.msra.mxu0 0.0
        %200 = vmatpush.msra.mxu0 0.0
        %201 = vmatpush.msra.mxu0 0.0
        %202 = vmatpush.msra.mxu0 0.0
        %203 = vmatpush.msra.mxu0 0.0
        %204 = vmatpush.msra.mxu0 0.0
        %205 = vmatpush.msra.mxu0 0.0
        %206 = vmatpush.msra.mxu0 0.0
        %207 = vmatpush.msra.mxu0 0.0
        %208 = vmatpush.msra.mxu0 %v192
        %209 = vmatpush.msra.mxu0 %v176
        %210 = vmatpush.msra.mxu0 %v174
        %211 = vmatpush.msra.mxu0 %v172
        %212 = vmatpush.msra.mxu0 %v170
        %213 = vmatmul.f32.gmra.mxu0 %v188
        %v214 = vpop.f32.mrf.mxu0
        %v215 = vadd.f32 %v184, %v214
        %216 = vdwg.mxu0
        %217 = vmatpush.msra.mxu0 0.0
        %218 = vmatpush.msra.mxu0 0.0
        %219 = vmatpush.msra.mxu0 0.0
        %220 = vmatpush.msra.mxu0 0.0
        %221 = vmatpush.msra.mxu0 0.0
        %222 = vmatpush.msra.mxu0 0.0
        %223 = vmatpush.msra.mxu0 0.0
        %224 = vmatpush.msra.mxu0 0.0
        %225 = vmatpush.msra.mxu0 0.0
        %226 = vmatpush.msra.mxu0 0.0
        %227 = vmatpush.msra.mxu0 0.0
        %228 = vmatpush.msra.mxu0 %v195
        %229 = vmatpush.msra.mxu0 %v177
        %230 = vmatpush.msra.mxu0 %v175
        %231 = vmatpush.msra.mxu0 %v173
        %232 = vmatpush.msra.mxu0 %v171
        %233 = vmatmul.f32.gmra.mxu0 %v188
        %v234 = vpop.f32.mrf.mxu0
        %v235 = vadd.f32 %v184, %v234
        %236 = vdwg.mxu0
        %v237 = vmax.f32 %v215, 0.0
        %v238 = vmax.f32 %v235, 0.0
        %239 = vst [vmem:[%s163] sm:$0xff] %v237
        %240 = vst [vmem:[%s163 + $0x8] sm:$0xff] %v238
        %s241 = sand.u32 %s93, 1
        %s242 = scalar_lea.sflag [#allocation3], %s241
        %s243 = sand.u32 %s93, 1
        %s244 = smul.addr %s243, 16
        %s245 = scalar_lea.vmem [#allocation2], %s244
        // Predicated region
        $region33: #{tpu_custom_call.1} parent=31 // pred_check
          %p246 = pneg %p103
        $region34: #{tpu_custom_call.1} parent=31 // pred_check_branch
          %248 = sbr.rel (%p246) target = $region36
        $region35: #{tpu_custom_call.1} parent=31 // pred_region
          %250 = vsyncadd %s242, 0
          %s251 = smul.addr %s17, 2
          %s252 = smul.addr %s251, 8
          %s253 = scalar_lea.hbm %s3, %s252
          %s255 = sshll.u32 %s245, 4
          %s256 = int_to_ptr.vmem [resolvable:$true] %s255
          %s257 = sshll.u32 %s253, 4
          %s258 = int_to_ptr.hbm [resolvable:$true] %s257
          %260 = dma.vmem_to_hbm [thread:$0]  %s256, 256, %s258, %s242
        $region36: #{tpu_custom_call.1} parent=31 // pred_fallthru
          _
      $region32: #{tpu_custom_call.1} parent=5 // pred_fallthru
        _
      %p261 = scmp.le.s32.totalorder 2, %s12
      // Predicated region
      $region37: #{tpu_custom_call.1} parent=5 // pred_check
        %p262 = pneg %p261
      $region38: #{tpu_custom_call.1} parent=5 // pred_check_branch
        %264 = sbr.rel (%p262) target = $region40
      $region39: #{tpu_custom_call.1} parent=5 // pred_region
        %s265 = ssub.s32 %s12, 2
        // Predicated region
        $region41: #{tpu_custom_call.1} parent=39 // pred_check
          %p266 = pneg %p109
        $region42: #{tpu_custom_call.1} parent=39 // pred_check_branch
          %268 = sbr.rel (%p266) target = $region44
        $region43: #{tpu_custom_call.1} parent=39 // pred_region
          %s269 = sand.u32 %s94, 1
          %s270 = scalar_lea.sflag [#allocation3], %s269
          %s271 = sand.u32 %s94, 1
          %s272 = smul.addr %s271, 16
          %s273 = scalar_lea.vmem [#allocation2], %s272
          %275 = dma.done %s270, 256
        $region44: #{tpu_custom_call.1} parent=39 // pred_fallthru
          _
      $region40: #{tpu_custom_call.1} parent=5 // pred_fallthru
        _
    $region6: #{tpu_custom_call.1} parent=1 // loop_footer
      %s16 = sadd.s32 1, %s12
    $region7: #{tpu_custom_call.1} parent=1 // loop_footer_branch
      %11 = sbr.rel target = $region3
    $region8: #{tpu_custom_call.1} parent=1 // loop_exit
      _
    %276 = vsyncpa [#allocation3], 1
    %s277 = scalar_lea.sflag [#allocation3], 1
    %278 = vsyncpa %s277, 1

</llo_original>
